<compile_context>
chip_gen: v5e
topology: v5e:2x2
jax: 0.10.0
libtpu: 0.0.40
codegen_flags: <defaults>
</compile_context>

<pallas_src>
import functools

import jax
import jax.numpy as jnp
from jax.experimental import pallas as pl
from jax.experimental.pallas import tpu as pltpu


def _round_up(x, m):
    return ((x + m - 1) // m) * m


# ---------------------------------------------------------------------------
# Kernel 1: Z = X @ W   (dense feature transform inside GraphConv)
# ---------------------------------------------------------------------------
def _xw_kernel(x_ref, w_ref, z_ref):
    z_ref[...] = jnp.dot(x_ref[...], w_ref[...],
                         preferred_element_type=jnp.float32)


def _feature_transform(x_p, w_p, *, tile_m):
    n_p, c_in = x_p.shape
    h_p = w_p.shape[1]
    return pl.pallas_call(
        _xw_kernel,
        out_shape=jax.ShapeDtypeStruct((n_p, h_p), jnp.float32),
        grid_spec=pltpu.PrefetchScalarGridSpec(
            num_scalar_prefetch=0,
            grid=(n_p // tile_m,),
            in_specs=[
                pl.BlockSpec((tile_m, c_in), lambda i: (i, 0)),
                pl.BlockSpec((c_in, h_p), lambda i: (0, 0)),
            ],
            out_specs=pl.BlockSpec((tile_m, h_p), lambda i: (i, 0)),
        ),
        compiler_params=pltpu.CompilerParams(
            dimension_semantics=("parallel",),
            vmem_limit_bytes=32 * 1024 * 1024,
        ),
    )(x_p, w_p)


# ---------------------------------------------------------------------------
# Kernel 2: one aggregation step   out = finalize(A_hat @ h_prev)
#   is_conv=True : finalize = relu(agg + bias)             (GraphConv)
#   is_conv=False: finalize = (1-alpha)*agg + alpha*h0     (APPNP step)
# ---------------------------------------------------------------------------
def _agg_kernel(h_ref, c_ref, a_ref, o_ref, acc_ref, *, alpha, is_conv, tile_n):
    j = pl.program_id(1)

    @pl.when(j == 0)
    def _():
        acc_ref[...] = jnp.zeros_like(acc_ref)

    # Reduction operand: slice the VMEM-resident previous h (rows j*tile_n ...).
    row = pl.multiple_of(j * tile_n, tile_n)
    h_blk = h_ref[pl.ds(row, tile_n), :].astype(jnp.bfloat16)
    acc_ref[...] += jnp.dot(a_ref[...], h_blk,
                            preferred_element_type=jnp.float32)

    @pl.when(j == pl.num_programs(1) - 1)
    def _():
        agg = acc_ref[...]
        if is_conv:
            res = jnp.maximum(agg + c_ref[...], 0.0)          # relu(A@XW + b)
        else:
            res = (1.0 - alpha) * agg + alpha * c_ref[...]    # APPNP blend (f32)
        o_ref[...] = res.astype(o_ref.dtype)


def _aggregate(a_bf16, h_prev, c, *, alpha, is_conv, tile_m, tile_n):
    n_p, h_p = h_prev.shape
    grid = (n_p // tile_m, n_p // tile_n)
    if is_conv:
        c_spec = pl.BlockSpec((1, h_p), lambda i, j: (0, 0))       # bias
    else:
        c_spec = pl.BlockSpec((tile_m, h_p), lambda i, j: (i, 0))  # h0 row tile
    kernel = functools.partial(
        _agg_kernel, alpha=float(alpha), is_conv=is_conv, tile_n=tile_n)
    return pl.pallas_call(
        kernel,
        out_shape=jax.ShapeDtypeStruct((n_p, h_p), jnp.float32),
        grid_spec=pltpu.PrefetchScalarGridSpec(
            num_scalar_prefetch=0,
            grid=grid,
            in_specs=[
                # previous h (or X@W): small (N_pad x 128), kept fully resident.
                pl.BlockSpec((n_p, h_p), lambda i, j: (0, 0)),
                c_spec,
                # A_hat streamed tile-by-tile in bf16 (dominant HBM operand).
                pl.BlockSpec((tile_m, tile_n), lambda i, j: (i, j)),
            ],
            out_specs=pl.BlockSpec((tile_m, h_p), lambda i, j: (i, 0)),
            scratch_shapes=[pltpu.VMEM((tile_m, h_p), jnp.float32)],
        ),
        compiler_params=pltpu.CompilerParams(
            dimension_semantics=("parallel", "arbitrary"),
            vmem_limit_bytes=32 * 1024 * 1024,
        ),
    )(h_prev, c, a_bf16)


# ---------------------------------------------------------------------------
# Full forward pass
# ---------------------------------------------------------------------------
@functools.partial(jax.jit, static_argnames=("alpha", "k"))
def gnn_forward(x, w, b, a_hat, *, alpha, k):
    """x: (N, C_in), w: (C_in, H), b: (1, H), a_hat: (N, N)  ->  (N, H)."""
    n = x.shape[0]
    h_dim = w.shape[1]

    tile = 256 if n >= 256 else 128     # 256-aligned tiles for larger graphs (v6e/v7x)
    n_p = _round_up(n, tile)
    h_p = _round_up(h_dim, 128)         # lane-dense hidden dim

    x_p = jnp.pad(x.astype(jnp.float32), ((0, n_p - n), (0, 0)))
    w_p = jnp.pad(w.astype(jnp.float32), ((0, 0), (0, h_p - h_dim)))
    b_p = jnp.pad(b.astype(jnp.float32), ((0, 0), (0, h_p - h_dim)))
    a_p = jnp.pad(a_hat.astype(jnp.float32),
                  ((0, n_p - n), (0, n_p - n))).astype(jnp.bfloat16)

    z = _feature_transform(x_p, w_p, tile_m=tile)                   # X @ W
    h0 = _aggregate(a_p, z, b_p, alpha=alpha, is_conv=True,
                    tile_m=tile, tile_n=tile)                       # relu(A@Z + b)
    h = h0
    for _ in range(int(k)):                                         # APPNP power iters
        h = _aggregate(a_p, h, h0, alpha=alpha, is_conv=False,
                       tile_m=tile, tile_n=tile)
    return h[:n, :h_dim]


def build_normalized_adjacency(edge_index, num_nodes):
    """Dense symmetric-normalized adjacency with self-loops (GCN norm)."""
    # TODO(synk): edges that are already self-loops get weight 2.0 before
    #             normalization; this differs slightly from DGL add_self_loop.
    src, dst = edge_index[0], edge_index[1]
    adj = jnp.zeros((num_nodes, num_nodes), dtype=jnp.float32)
    adj = adj.at[src, dst].set(1.0)
    adj = adj.at[dst, src].set(1.0)                       # treat as undirected
    adj = adj + jnp.eye(num_nodes, dtype=jnp.float32)     # self-loops
    deg = jnp.sum(adj, axis=1)
    d_inv_sqrt = 1.0 / jnp.sqrt(jnp.maximum(deg, 1.0))
    return adj * d_inv_sqrt[:, None] * d_inv_sqrt[None, :]


def _reference(x, w, b, a_hat, alpha, k):
    """Pure-JAX f32 reference of the same forward pass."""
    h = jnp.maximum(a_hat @ (x @ w) + b, 0.0)
    h0 = h
    for _ in range(k):
        h = (1.0 - alpha) * (a_hat @ h) + alpha * h0
    return h


if __name__ == "__main__":
    key = jax.random.PRNGKey(0)
    k_x, k_e, k_w, k_b = jax.random.split(key, 4)

    # small, TPU-friendly shapes
    num_nodes = 128
    in_channels = 16
    hidden_channels = 32
    num_edges = 512
    alpha = 0.1
    k_steps = 4

    features = jax.random.normal(k_x, (num_nodes, in_channels), dtype=jnp.float32)
    edge_index = jax.random.randint(k_e, (2, num_edges), 0, num_nodes, dtype=jnp.int32)

    scale = 1.0 / jnp.sqrt(jnp.float32(in_channels))
    weight = jax.random.uniform(
        k_w, (in_channels, hidden_channels), minval=-scale, maxval=scale,
        dtype=jnp.float32)
    bias = jax.random.uniform(
        k_b, (1, hidden_channels), minval=-scale, maxval=scale,
        dtype=jnp.float32)

    a_hat = build_normalized_adjacency(edge_index, num_nodes)

    out = gnn_forward(features, weight, bias, a_hat, alpha=alpha, k=k_steps)
    out = jax.block_until_ready(out)

    ref = _reference(features, weight, bias, a_hat, alpha, k_steps)

    assert out.shape == (num_nodes, hidden_channels)
    assert bool(jnp.all(jnp.isfinite(out)))
    # bf16 adjacency + f32 accumulation: loose tolerance vs f32 reference.
    assert bool(jnp.allclose(out, ref, rtol=5e-2, atol=5e-2)), \
        float(jnp.max(jnp.abs(out - ref)))
    print("KERNEL_OK")
</pallas_src>

<mosaic_0001>
module attributes {stable_mosaic.version = 11 : i64} {
  func.func @_agg_kernel(%arg0: i32, %arg1: i32, %arg2: memref<128x128xf32, #tpu.memory_space<vmem>>, %arg3: memref<128x128xf32, #tpu.memory_space<vmem>>, %arg4: memref<128x128xbf16, #tpu.memory_space<vmem>>, %arg5: memref<128x128xf32, #tpu.memory_space<vmem>>, %arg6: memref<128x128xf32, #tpu.memory_space<vmem>>) attributes {dimension_semantics = [#tpu.dimension_semantics<parallel>, #tpu.dimension_semantics<arbitrary>], iteration_bounds = array<i64: 1, 1>, scalar_prefetch = 0 : i64, scratch_operands = 1 : i64, tpu.core_type = #tpu.core_type<tc>, window_params = [{pipeline_mode = #tpu.pipeline_mode<synchronous>, transform_indices = @transform_0, window_bounds = array<i64: 128, 128>}, {transform_indices = @transform_1, window_bounds = array<i64: 128, 128>}, {transform_indices = @transform_2, window_bounds = array<i64: 128, 128>}, {transform_indices = @transform_3, window_bounds = array<i64: 128, 128>}]} {
    %c0_i32 = arith.constant 0 : i32
    %0 = arith.cmpi eq, %arg1, %c0_i32 : i32
    %1 = arith.extui %0 : i1 to i32
    %c0_i32_0 = arith.constant 0 : i32
    %2 = arith.cmpi ne, %1, %c0_i32_0 : i32
    scf.if %2 {
      %cst_9 = arith.constant 0.000000e+00 : f32
      %16 = vector.broadcast %cst_9 : f32 to vector<128x128xf32>
      %c0_10 = arith.constant 0 : index
      %c0_11 = arith.constant 0 : index
      %17 = vector.load %arg6[%c0_10, %c0_11] : memref<128x128xf32, #tpu.memory_space<vmem>>, vector<128x128xf32>
      tpu.vector_store %arg6[%c0_10, %c0_11], %16 {strides = array<i32>} : memref<128x128xf32, #tpu.memory_space<vmem>>, vector<128x128xf32>,
    } else {
    }
    %c128_i32 = arith.constant 128 : i32
    %3 = arith.muli %arg1, %c128_i32 : i32
    %4 = tpu.assume_multiple %3, 128 : i32
    %5 = arith.index_cast %4 : i32 to index
    %c0 = arith.constant 0 : index
    %6 = vector.load %arg2[%5, %c0] : memref<128x128xf32, #tpu.memory_space<vmem>>, vector<128x128xf32>
    %7 = arith.truncf %6 : vector<128x128xf32> to vector<128x128xbf16>
    %c0_1 = arith.constant 0 : index
    %c0_2 = arith.constant 0 : index
    %8 = vector.load %arg6[%c0_1, %c0_2] : memref<128x128xf32, #tpu.memory_space<vmem>>, vector<128x128xf32>
    %c0_3 = arith.constant 0 : index
    %c0_4 = arith.constant 0 : index
    %9 = vector.load %arg4[%c0_3, %c0_4] : memref<128x128xbf16, #tpu.memory_space<vmem>>, vector<128x128xbf16>
    %cst = arith.constant dense<0.000000e+00> : vector<128x128xf32>
    %10 = tpu.matmul %9, %7, %cst {dimension_numbers = #tpu.dot_dimension_numbers<[1], [0], [0], [1], [0, 0, 1, 1], [], []>} : vector<128x128xbf16>, vector<128x128xbf16>, vector<128x128xf32> -> vector<128x128xf32>
    %11 = arith.addf %8, %10 : vector<128x128xf32>
    %c0_5 = arith.constant 0 : index
    %c0_6 = arith.constant 0 : index
    %12 = vector.load %arg6[%c0_5, %c0_6] : memref<128x128xf32, #tpu.memory_space<vmem>>, vector<128x128xf32>
    tpu.vector_store %arg6[%c0_5, %c0_6], %11 {strides = array<i32>} : memref<128x128xf32, #tpu.memory_space<vmem>>, vector<128x128xf32>,
    %c0_i32_7 = arith.constant 0 : i32
    %13 = arith.cmpi eq, %arg1, %c0_i32_7 : i32
    %14 = arith.extui %13 : i1 to i32
    %c0_i32_8 = arith.constant 0 : i32
    %15 = arith.cmpi ne, %14, %c0_i32_8 : i32
    scf.if %15 {
      %c0_9 = arith.constant 0 : index
      %c0_10 = arith.constant 0 : index
      %16 = vector.load %arg6[%c0_9, %c0_10] : memref<128x128xf32, #tpu.memory_space<vmem>>, vector<128x128xf32>
      %cst_11 = arith.constant 0.899999976 : f32
      %17 = vector.broadcast %cst_11 : f32 to vector<128x128xf32>
      %18 = arith.mulf %17, %16 : vector<128x128xf32>
      %c0_12 = arith.constant 0 : index
      %c0_13 = arith.constant 0 : index
      %19 = vector.load %arg3[%c0_12, %c0_13] : memref<128x128xf32, #tpu.memory_space<vmem>>, vector<128x128xf32>
      %cst_14 = arith.constant 1.000000e-01 : f32
      %20 = vector.broadcast %cst_14 : f32 to vector<128x128xf32>
      %21 = arith.mulf %20, %19 : vector<128x128xf32>
      %22 = arith.addf %18, %21 : vector<128x128xf32>
      %c0_15 = arith.constant 0 : index
      %c0_16 = arith.constant 0 : index
      %23 = vector.load %arg5[%c0_15, %c0_16] : memref<128x128xf32, #tpu.memory_space<vmem>>, vector<128x128xf32>
      tpu.vector_store %arg5[%c0_15, %c0_16], %22 {strides = array<i32>} : memref<128x128xf32, #tpu.memory_space<vmem>>, vector<128x128xf32>,
    } else {
    }
    return
  }
  func.func @transform_0(%arg0: i32, %arg1: i32) -> (i32, i32) {
    %c0_i32 = arith.constant 0 : i32
    %c0_i32_0 = arith.constant 0 : i32
    %c0_i32_1 = arith.constant 0 : i32
    return %c0_i32, %c0_i32_0 : i32, i32
  }
  func.func @transform_1(%arg0: i32, %arg1: i32) -> (i32, i32) {
    %c0_i32 = arith.constant 0 : i32
    %c0_i32_0 = arith.constant 0 : i32
    return %arg0, %c0_i32 : i32, i32
  }
  func.func @transform_2(%arg0: i32, %arg1: i32) -> (i32, i32) {
    %c0_i32 = arith.constant 0 : i32
    return %arg0, %arg1 : i32, i32
  }
  func.func @transform_3(%arg0: i32, %arg1: i32) -> (i32, i32) {
    %c0_i32 = arith.constant 0 : i32
    %c0_i32_0 = arith.constant 0 : i32
    return %arg0, %c0_i32 : i32, i32
  }
}

module attributes {stable_mosaic.version = 11 : i64} {
  func.func @_agg_kernel(%arg0: i32, %arg1: i32, %arg2: memref<128x128xf32, #tpu.memory_space<vmem>>, %arg3: memref<1x128xf32, #tpu.memory_space<vmem>>, %arg4: memref<128x128xbf16, #tpu.memory_space<vmem>>, %arg5: memref<128x128xf32, #tpu.memory_space<vmem>>, %arg6: memref<128x128xf32, #tpu.memory_space<vmem>>) attributes {dimension_semantics = [#tpu.dimension_semantics<parallel>, #tpu.dimension_semantics<arbitrary>], iteration_bounds = array<i64: 1, 1>, scalar_prefetch = 0 : i64, scratch_operands = 1 : i64, tpu.core_type = #tpu.core_type<tc>, window_params = [{pipeline_mode = #tpu.pipeline_mode<synchronous>, transform_indices = @transform_0, window_bounds = array<i64: 128, 128>}, {pipeline_mode = #tpu.pipeline_mode<synchronous>, transform_indices = @transform_1, window_bounds = array<i64: 1, 128>}, {transform_indices = @transform_2, window_bounds = array<i64: 128, 128>}, {transform_indices = @transform_3, window_bounds = array<i64: 128, 128>}]} {
    %c0_i32 = arith.constant 0 : i32
    %0 = arith.cmpi eq, %arg1, %c0_i32 : i32
    %1 = arith.extui %0 : i1 to i32
    %c0_i32_0 = arith.constant 0 : i32
    %2 = arith.cmpi ne, %1, %c0_i32_0 : i32
    scf.if %2 {
      %cst_9 = arith.constant 0.000000e+00 : f32
      %16 = vector.broadcast %cst_9 : f32 to vector<128x128xf32>
      %c0_10 = arith.constant 0 : index
      %c0_11 = arith.constant 0 : index
      %17 = vector.load %arg6[%c0_10, %c0_11] : memref<128x128xf32, #tpu.memory_space<vmem>>, vector<128x128xf32>
      tpu.vector_store %arg6[%c0_10, %c0_11], %16 {strides = array<i32>} : memref<128x128xf32, #tpu.memory_space<vmem>>, vector<128x128xf32>,
    } else {
    }
    %c128_i32 = arith.constant 128 : i32
    %3 = arith.muli %arg1, %c128_i32 : i32
    %4 = tpu.assume_multiple %3, 128 : i32
    %5 = arith.index_cast %4 : i32 to index
    %c0 = arith.constant 0 : index
    %6 = vector.load %arg2[%5, %c0] : memref<128x128xf32, #tpu.memory_space<vmem>>, vector<128x128xf32>
    %7 = arith.truncf %6 : vector<128x128xf32> to vector<128x128xbf16>
    %c0_1 = arith.constant 0 : index
    %c0_2 = arith.constant 0 : index
    %8 = vector.load %arg6[%c0_1, %c0_2] : memref<128x128xf32, #tpu.memory_space<vmem>>, vector<128x128xf32>
    %c0_3 = arith.constant 0 : index
    %c0_4 = arith.constant 0 : index
    %9 = vector.load %arg4[%c0_3, %c0_4] : memref<128x128xbf16, #tpu.memory_space<vmem>>, vector<128x128xbf16>
    %cst = arith.constant dense<0.000000e+00> : vector<128x128xf32>
    %10 = tpu.matmul %9, %7, %cst {dimension_numbers = #tpu.dot_dimension_numbers<[1], [0], [0], [1], [0, 0, 1, 1], [], []>} : vector<128x128xbf16>, vector<128x128xbf16>, vector<128x128xf32> -> vector<128x128xf32>
    %11 = arith.addf %8, %10 : vector<128x128xf32>
    %c0_5 = arith.constant 0 : index
    %c0_6 = arith.constant 0 : index
    %12 = vector.load %arg6[%c0_5, %c0_6] : memref<128x128xf32, #tpu.memory_space<vmem>>, vector<128x128xf32>
    tpu.vector_store %arg6[%c0_5, %c0_6], %11 {strides = array<i32>} : memref<128x128xf32, #tpu.memory_space<vmem>>, vector<128x128xf32>,
    %c0_i32_7 = arith.constant 0 : i32
    %13 = arith.cmpi eq, %arg1, %c0_i32_7 : i32
    %14 = arith.extui %13 : i1 to i32
    %c0_i32_8 = arith.constant 0 : i32
    %15 = arith.cmpi ne, %14, %c0_i32_8 : i32
    scf.if %15 {
      %c0_9 = arith.constant 0 : index
      %c0_10 = arith.constant 0 : index
      %16 = vector.load %arg6[%c0_9, %c0_10] : memref<128x128xf32, #tpu.memory_space<vmem>>, vector<128x128xf32>
      %c0_11 = arith.constant 0 : index
      %c0_12 = arith.constant 0 : index
      %17 = vector.load %arg3[%c0_11, %c0_12] : memref<1x128xf32, #tpu.memory_space<vmem>>, vector<1x128xf32>
      %18 = vector.broadcast %17 : vector<1x128xf32> to vector<128x128xf32>
      %19 = arith.addf %16, %18 : vector<128x128xf32>
      %cst_13 = arith.constant 0.000000e+00 : f32
      %20 = vector.broadcast %cst_13 : f32 to vector<128x128xf32>
      %21 = arith.maximumf %19, %20 : vector<128x128xf32>
      %c0_14 = arith.constant 0 : index
      %c0_15 = arith.constant 0 : index
      %22 = vector.load %arg5[%c0_14, %c0_15] : memref<128x128xf32, #tpu.memory_space<vmem>>, vector<128x128xf32>
      tpu.vector_store %arg5[%c0_14, %c0_15], %21 {strides = array<i32>} : memref<128x128xf32, #tpu.memory_space<vmem>>, vector<128x128xf32>,
    } else {
    }
    return
  }
  func.func @transform_0(%arg0: i32, %arg1: i32) -> (i32, i32) {
    %c0_i32 = arith.constant 0 : i32
    %c0_i32_0 = arith.constant 0 : i32
    %c0_i32_1 = arith.constant 0 : i32
    return %c0_i32, %c0_i32_0 : i32, i32
  }
  func.func @transform_1(%arg0: i32, %arg1: i32) -> (i32, i32) {
    %c0_i32 = arith.constant 0 : i32
    %c0_i32_0 = arith.constant 0 : i32
    %c0_i32_1 = arith.constant 0 : i32
    return %c0_i32, %c0_i32_0 : i32, i32
  }
  func.func @transform_2(%arg0: i32, %arg1: i32) -> (i32, i32) {
    %c0_i32 = arith.constant 0 : i32
    return %arg0, %arg1 : i32, i32
  }
  func.func @transform_3(%arg0: i32, %arg1: i32) -> (i32, i32) {
    %c0_i32 = arith.constant 0 : i32
    %c0_i32_0 = arith.constant 0 : i32
    return %arg0, %c0_i32 : i32, i32
  }
}

module attributes {stable_mosaic.version = 11 : i64} {
  func.func @_xw_kernel(%arg0: i32, %arg1: memref<128x16xf32, #tpu.memory_space<vmem>>, %arg2: memref<16x128xf32, #tpu.memory_space<vmem>>, %arg3: memref<128x128xf32, #tpu.memory_space<vmem>>) attributes {dimension_semantics = [#tpu.dimension_semantics<parallel>], iteration_bounds = array<i64: 1>, scalar_prefetch = 0 : i64, scratch_operands = 0 : i64, tpu.core_type = #tpu.core_type<tc>, window_params = [{transform_indices = @transform_0, window_bounds = array<i64: 128, 16>}, {pipeline_mode = #tpu.pipeline_mode<synchronous>, transform_indices = @transform_1, window_bounds = array<i64: 16, 128>}, {transform_indices = @transform_2, window_bounds = array<i64: 128, 128>}]} {
    %c0 = arith.constant 0 : index
    %c0_0 = arith.constant 0 : index
    %0 = vector.load %arg1[%c0, %c0_0] : memref<128x16xf32, #tpu.memory_space<vmem>>, vector<128x16xf32>
    %c0_1 = arith.constant 0 : index
    %c0_2 = arith.constant 0 : index
    %1 = vector.load %arg2[%c0_1, %c0_2] : memref<16x128xf32, #tpu.memory_space<vmem>>, vector<16x128xf32>
    %cst = arith.constant dense<0.000000e+00> : vector<128x128xf32>
    %2 = tpu.matmul %0, %1, %cst {dimension_numbers = #tpu.dot_dimension_numbers<[1], [0], [0], [1], [0, 0, 1, 1], [], []>} : vector<128x16xf32>, vector<16x128xf32>, vector<128x128xf32> -> vector<128x128xf32>
    %c0_3 = arith.constant 0 : index
    %c0_4 = arith.constant 0 : index
    %3 = vector.load %arg3[%c0_3, %c0_4] : memref<128x128xf32, #tpu.memory_space<vmem>>, vector<128x128xf32>
    tpu.vector_store %arg3[%c0_3, %c0_4], %2 {strides = array<i32>} : memref<128x128xf32, #tpu.memory_space<vmem>>, vector<128x128xf32>,
    return
  }
  func.func @transform_0(%arg0: i32) -> (i32, i32) {
    %c0_i32 = arith.constant 0 : i32
    %c0_i32_0 = arith.constant 0 : i32
    return %arg0, %c0_i32 : i32, i32
  }
  func.func @transform_1(%arg0: i32) -> (i32, i32) {
    %c0_i32 = arith.constant 0 : i32
    %c0_i32_0 = arith.constant 0 : i32
    %c0_i32_1 = arith.constant 0 : i32
    return %c0_i32, %c0_i32_0 : i32, i32
  }
  func.func @transform_2(%arg0: i32) -> (i32, i32) {
    %c0_i32 = arith.constant 0 : i32
    %c0_i32_0 = arith.constant 0 : i32
    return %arg0, %c0_i32 : i32, i32
  }
}

</mosaic_0001>

<llo_original>
// kernel: gnn_forward.6
$region0: #{gnn_forward.6}
  #allocation0 [shape = 'u32[]', space=smem, size = 0x4, offset = 0x4, fixed_abs, tag = 'smem constant byte address 0x4 - core index']
  #allocation1 [shape = 'u32[72,128]{1,0:T(1,128)}', space=vmem, size = 0x9000, scoped, tag = 'internal scratch']
  %s0 = inlined_call_operand.vmem [shape: f32[128,16], index: 0, kind: input, shape index: {}]
  %s1 = inlined_call_operand.vmem [shape: f32[16,128], index: 1, kind: input, shape index: {}]
  %s2 = inlined_call_operand.vmem [shape: f32[128,128], index: 2, kind: output, shape index: {}]
  %s3 = sld [smem:[#allocation0]]
  $region18: #{gnn_forward.6} parent=0
    _
  %s5 = ssub.s32 1, %s3
  %s6 = scalar_select 0, %s5, %s3
  // Predicated region
  $region2: #{gnn_forward.6} parent=0 // pred_check
    _
  $region3: #{gnn_forward.6} parent=0 // pred_check_branch
    %8 = sbr.rel (0) target = $region5
  $region4: #{gnn_forward.6} parent=0 // pred_region
    _
  $region5: #{gnn_forward.6} parent=0 // pred_fallthru
    _
  // Predicated region
  $region6: #{gnn_forward.6} parent=0 // pred_check
    _
  $region7: #{gnn_forward.6} parent=0 // pred_check_branch
    %10 = sbr.rel (0) target = $region9
  $region8: #{gnn_forward.6} parent=0 // pred_region
    _
  $region9: #{gnn_forward.6} parent=0 // pred_fallthru
    _
  %v11 = vld [vmem:[%s0] sm:$0xff]
  %v12 = vld [vmem:[%s0 + $0x8] sm:$0xff]
  %v13 = vld [vmem:[%s0 + $0x10] sm:$0xff]
  %v14 = vld [vmem:[%s0 + $0x18] sm:$0xff]
  %v15 = vld [vmem:[%s0 + $0x20] sm:$0xff]
  %v16 = vld [vmem:[%s0 + $0x28] sm:$0xff]
  %v17 = vld [vmem:[%s0 + $0x30] sm:$0xff]
  %v18 = vld [vmem:[%s0 + $0x38] sm:$0xff]
  %v19 = vld [vmem:[%s0 + $0x40] sm:$0xff]
  %v20 = vld [vmem:[%s0 + $0x48] sm:$0xff]
  %v21 = vld [vmem:[%s0 + $0x50] sm:$0xff]
  %v22 = vld [vmem:[%s0 + $0x58] sm:$0xff]
  %v23 = vld [vmem:[%s0 + $0x60] sm:$0xff]
  %v24 = vld [vmem:[%s0 + $0x68] sm:$0xff]
  %v25 = vld [vmem:[%s0 + $0x70] sm:$0xff]
  %v26 = vld [vmem:[%s0 + $0x78] sm:$0xff]
  %v27 = vld [vmem:[%s1] sm:$0xff]
  %v28 = vld [vmem:[%s1 + $0x8] sm:$0xff]
  %vm29 = vcmask 130048
  %v31 = vsel %vm29, %v11, 0
  %v34 = vsel %vm29, %v12, 0
  %v37 = vsel %vm29, %v13, 0
  %v40 = vsel %vm29, %v14, 0
  %v43 = vsel %vm29, %v15, 0
  %v46 = vsel %vm29, %v16, 0
  %v49 = vsel %vm29, %v17, 0
  %v52 = vsel %vm29, %v18, 0
  %v55 = vsel %vm29, %v19, 0
  %v58 = vsel %vm29, %v20, 0
  %v61 = vsel %vm29, %v21, 0
  %v64 = vsel %vm29, %v22, 0
  %v67 = vsel %vm29, %v23, 0
  %v70 = vsel %vm29, %v24, 0
  %v73 = vsel %vm29, %v25, 0
  %v76 = vsel %vm29, %v26, 0
  %78 = vmatpush.msra.mxu0 0.0
  %79 = vmatpush.msra.mxu0 0.0
  %80 = vmatpush.msra.mxu0 0.0
  %81 = vmatpush.msra.mxu0 0.0
  %82 = vmatpush.msra.mxu0 0.0
  %83 = vmatpush.msra.mxu0 0.0
  %84 = vmatpush.msra.mxu0 0.0
  %85 = vmatpush.msra.mxu0 0.0
  %86 = vmatpush.msra.mxu0 0.0
  %87 = vmatpush.msra.mxu0 0.0
  %88 = vmatpush.msra.mxu0 0.0
  %89 = vmatpush.msra.mxu0 0.0
  %90 = vmatpush.msra.mxu0 0.0
  %91 = vmatpush.msra.mxu0 0.0
  %92 = vmatpush.msra.mxu0 %v28
  %93 = vmatpush.msra.mxu0 %v27
  %94 = vmatmul.f32.gmra.mxu0 %v31
  %v95 = vpop.f32.mrf.mxu0
  %v96 = vadd.f32 0.0, %v95
  %97 = vmatmul.f32.gmra.mxu0 %v34
  %v98 = vpop.f32.mrf.mxu0
  %v99 = vadd.f32 0.0, %v98
  %100 = vmatmul.f32.gmra.mxu0 %v37
  %v101 = vpop.f32.mrf.mxu0
  %v102 = vadd.f32 0.0, %v101
  %103 = vmatmul.f32.gmra.mxu0 %v40
  %v104 = vpop.f32.mrf.mxu0
  %v105 = vadd.f32 0.0, %v104
  %106 = vmatmul.f32.gmra.mxu0 %v43
  %v107 = vpop.f32.mrf.mxu0
  %v108 = vadd.f32 0.0, %v107
  %109 = vmatmul.f32.gmra.mxu0 %v46
  %v110 = vpop.f32.mrf.mxu0
  %v111 = vadd.f32 0.0, %v110
  %112 = vmatmul.f32.gmra.mxu0 %v49
  %v113 = vpop.f32.mrf.mxu0
  %v114 = vadd.f32 0.0, %v113
  %115 = vmatmul.f32.gmra.mxu0 %v52
  %v116 = vpop.f32.mrf.mxu0
  %v117 = vadd.f32 0.0, %v116
  %118 = vmatmul.f32.gmra.mxu0 %v55
  %v119 = vpop.f32.mrf.mxu0
  %v120 = vadd.f32 0.0, %v119
  %121 = vmatmul.f32.gmra.mxu0 %v58
  %v122 = vpop.f32.mrf.mxu0
  %v123 = vadd.f32 0.0, %v122
  %124 = vmatmul.f32.gmra.mxu0 %v61
  %v125 = vpop.f32.mrf.mxu0
  %v126 = vadd.f32 0.0, %v125
  %127 = vmatmul.f32.gmra.mxu0 %v64
  %v128 = vpop.f32.mrf.mxu0
  %v129 = vadd.f32 0.0, %v128
  %130 = vmatmul.f32.gmra.mxu0 %v67
  %v131 = vpop.f32.mrf.mxu0
  %v132 = vadd.f32 0.0, %v131
  %133 = vmatmul.f32.gmra.mxu0 %v70
  %v134 = vpop.f32.mrf.mxu0
  %v135 = vadd.f32 0.0, %v134
  %136 = vmatmul.f32.gmra.mxu0 %v73
  %v137 = vpop.f32.mrf.mxu0
  %v138 = vadd.f32 0.0, %v137
  %139 = vmatmul.f32.gmra.mxu0 %v76
  %v140 = vpop.f32.mrf.mxu0
  %v141 = vadd.f32 0.0, %v140
  %142 = vdwg.mxu0
  %143 = vst [vmem:[%s2] sm:$0xff] %v96
  %144 = vst [vmem:[%s2 + $0x8] sm:$0xff] %v99
  %145 = vst [vmem:[%s2 + $0x10] sm:$0xff] %v102
  %146 = vst [vmem:[%s2 + $0x18] sm:$0xff] %v105
  %147 = vst [vmem:[%s2 + $0x20] sm:$0xff] %v108
  %148 = vst [vmem:[%s2 + $0x28] sm:$0xff] %v111
  %149 = vst [vmem:[%s2 + $0x30] sm:$0xff] %v114
  %150 = vst [vmem:[%s2 + $0x38] sm:$0xff] %v117
  %151 = vst [vmem:[%s2 + $0x40] sm:$0xff] %v120
  %152 = vst [vmem:[%s2 + $0x48] sm:$0xff] %v123
  %153 = vst [vmem:[%s2 + $0x50] sm:$0xff] %v126
  %154 = vst [vmem:[%s2 + $0x58] sm:$0xff] %v129
  %155 = vst [vmem:[%s2 + $0x60] sm:$0xff] %v132
  %156 = vst [vmem:[%s2 + $0x68] sm:$0xff] %v135
  %157 = vst [vmem:[%s2 + $0x70] sm:$0xff] %v138
  %158 = vst [vmem:[%s2 + $0x78] sm:$0xff] %v141
  // Predicated region
  $region10: #{gnn_forward.6} parent=0 // pred_check
    _
  $region11: #{gnn_forward.6} parent=0 // pred_check_branch
    %160 = sbr.rel (0) target = $region13
  $region12: #{gnn_forward.6} parent=0 // pred_region
    _
  $region13: #{gnn_forward.6} parent=0 // pred_fallthru
    _
  // Predicated region
  $region14: #{gnn_forward.6} parent=0 // pred_check
    _
  $region15: #{gnn_forward.6} parent=0 // pred_check_branch
    %162 = sbr.rel (0) target = $region17
  $region16: #{gnn_forward.6} parent=0 // pred_region
    _
  $region17: #{gnn_forward.6} parent=0 // pred_fallthru
    _

// kernel: gnn_forward.8
$region0: #{gnn_forward.8}
  #allocation0 [shape = 'u32[]', space=smem, size = 0x4, offset = 0x4, fixed_abs, tag = 'smem constant byte address 0x4 - core index']
  #allocation1 [shape = 'u32[72,128]{1,0:T(1,128)}', space=vmem, size = 0x9000, scoped, tag = 'internal scratch']
  #allocation2 [shape = 'f32[128,128]{1,0:T(8,128)}', space=vmem, size = 0x10000, scoped, tag = 'scratch operand']
  %s0 = inlined_call_operand.vmem [shape: f32[128,128], index: 0, kind: input, shape index: {}, may-alias: {0,1}]
  %s1 = inlined_call_operand.vmem [shape: f32[128,128], index: 1, kind: input, shape index: {}, may-alias: {0,1}]
  %s2 = inlined_call_operand.vmem [shape: bf16[128,128], index: 2, kind: input, shape index: {}]
  %s3 = inlined_call_operand.vmem [shape: f32[128,128], index: 3, kind: output, shape index: {}]
  %s4 = sld [smem:[#allocation0]]
  $region30: #{gnn_forward.8} parent=0
    _
  %s6 = ssub.s32 1, %s4
  %s7 = scalar_select 0, %s6, %s4
  // Predicated region
  $region2: #{gnn_forward.8} parent=0 // pred_check
    _
  $region3: #{gnn_forward.8} parent=0 // pred_check_branch
    %9 = sbr.rel (0) target = $region5
  $region4: #{gnn_forward.8} parent=0 // pred_region
    _
  $region5: #{gnn_forward.8} parent=0 // pred_fallthru
    _
  // Predicated region
  $region6: #{gnn_forward.8} parent=0 // pred_check
    _
  $region7: #{gnn_forward.8} parent=0 // pred_check_branch
    %11 = sbr.rel (0) target = $region9
  $region8: #{gnn_forward.8} parent=0 // pred_region
    _
  $region9: #{gnn_forward.8} parent=0 // pred_fallthru
    _
  // Predicated region
  $region10: #{gnn_forward.8} parent=0 // pred_check
    _
  $region11: #{gnn_forward.8} parent=0 // pred_check_branch
    %13 = sbr.rel (0) target = $region13
  $region12: #{gnn_forward.8} parent=0 // pred_region
    _
  $region13: #{gnn_forward.8} parent=0 // pred_fallthru
    _
  %p14 = scmp.eq.s32.totalorder 0, 0
  // Predicated region
  $region14: #{gnn_forward.8} parent=0 // pred_check
    %p15 = pneg %p14
  $region15: #{gnn_forward.8} parent=0 // pred_check_branch
    %17 = sbr.rel (%p15) target = $region17
  $region16: #{gnn_forward.8} parent=0 // pred_region
    %18 = vst [vmem:[#allocation2] sm:$0xff] 0.0
    %19 = vst [vmem:[#allocation2 + $0x8] sm:$0xff] 0.0
    %20 = vst [vmem:[#allocation2 + $0x10] sm:$0xff] 0.0
    %21 = vst [vmem:[#allocation2 + $0x18] sm:$0xff] 0.0
    %22 = vst [vmem:[#allocation2 + $0x20] sm:$0xff] 0.0
    %23 = vst [vmem:[#allocation2 + $0x28] sm:$0xff] 0.0
    %24 = vst [vmem:[#allocation2 + $0x30] sm:$0xff] 0.0
    %25 = vst [vmem:[#allocation2 + $0x38] sm:$0xff] 0.0
    %26 = vst [vmem:[#allocation2 + $0x40] sm:$0xff] 0.0
    %27 = vst [vmem:[#allocation2 + $0x48] sm:$0xff] 0.0
    %28 = vst [vmem:[#allocation2 + $0x50] sm:$0xff] 0.0
    %29 = vst [vmem:[#allocation2 + $0x58] sm:$0xff] 0.0
    %30 = vst [vmem:[#allocation2 + $0x60] sm:$0xff] 0.0
    %31 = vst [vmem:[#allocation2 + $0x68] sm:$0xff] 0.0
    %32 = vst [vmem:[#allocation2 + $0x70] sm:$0xff] 0.0
    %33 = vst [vmem:[#allocation2 + $0x78] sm:$0xff] 0.0
  $region17: #{gnn_forward.8} parent=0 // pred_fallthru
    _
  %s34 = smul.u32 0, 128
  %s35 = scalar_lea.vmem %s0, %s34
  %v36 = vld [vmem:[%s35] sm:$0xff]
  %v37 = vld [vmem:[%s35 + $0x8] sm:$0xff]
  %v38 = vld [vmem:[%s35 + $0x10] sm:$0xff]
  %v39 = vld [vmem:[%s35 + $0x18] sm:$0xff]
  %v40 = vld [vmem:[%s35 + $0x20] sm:$0xff]
  %v41 = vld [vmem:[%s35 + $0x28] sm:$0xff]
  %v42 = vld [vmem:[%s35 + $0x30] sm:$0xff]
  %v43 = vld [vmem:[%s35 + $0x38] sm:$0xff]
  %v44 = vld [vmem:[%s35 + $0x40] sm:$0xff]
  %v45 = vld [vmem:[%s35 + $0x48] sm:$0xff]
  %v46 = vld [vmem:[%s35 + $0x50] sm:$0xff]
  %v47 = vld [vmem:[%s35 + $0x58] sm:$0xff]
  %v48 = vld [vmem:[%s35 + $0x60] sm:$0xff]
  %v49 = vld [vmem:[%s35 + $0x68] sm:$0xff]
  %v50 = vld [vmem:[%s35 + $0x70] sm:$0xff]
  %v51 = vld [vmem:[%s35 + $0x78] sm:$0xff]
  %v52 = vpack.c.bf16 %v37, %v36
  %v53 = vpack.c.bf16 %v39, %v38
  %v54 = vpack.c.bf16 %v41, %v40
  %v55 = vpack.c.bf16 %v43, %v42
  %v56 = vpack.c.bf16 %v45, %v44
  %v57 = vpack.c.bf16 %v47, %v46
  %v58 = vpack.c.bf16 %v49, %v48
  %v59 = vpack.c.bf16 %v51, %v50
  %v60 = vld [vmem:[#allocation2] sm:$0xff]
  %v61 = vld [vmem:[#allocation2 + $0x8] sm:$0xff]
  %v62 = vld [vmem:[#allocation2 + $0x10] sm:$0xff]
  %v63 = vld [vmem:[#allocation2 + $0x18] sm:$0xff]
  %v64 = vld [vmem:[#allocation2 + $0x20] sm:$0xff]
  %v65 = vld [vmem:[#allocation2 + $0x28] sm:$0xff]
  %v66 = vld [vmem:[#allocation2 + $0x30] sm:$0xff]
  %v67 = vld [vmem:[#allocation2 + $0x38] sm:$0xff]
  %v68 = vld [vmem:[#allocation2 + $0x40] sm:$0xff]
  %v69 = vld [vmem:[#allocation2 + $0x48] sm:$0xff]
  %v70 = vld [vmem:[#allocation2 + $0x50] sm:$0xff]
  %v71 = vld [vmem:[#allocation2 + $0x58] sm:$0xff]
  %v72 = vld [vmem:[#allocation2 + $0x60] sm:$0xff]
  %v73 = vld [vmem:[#allocation2 + $0x68] sm:$0xff]
  %v74 = vld [vmem:[#allocation2 + $0x70] sm:$0xff]
  %v75 = vld [vmem:[#allocation2 + $0x78] sm:$0xff]
  %v76 = vld [vmem:[%s2] sm:$0xf]
  %v77 = vld [vmem:[%s2 + $0x4] sm:$0xf]
  %v78 = vld [vmem:[%s2 + $0x8] sm:$0xf]
  %v79 = vld [vmem:[%s2 + $0xc] sm:$0xf]
  %v80 = vld [vmem:[%s2 + $0x10] sm:$0xf]
  %v81 = vld [vmem:[%s2 + $0x14] sm:$0xf]
  %v82 = vld [vmem:[%s2 + $0x18] sm:$0xf]
  %v83 = vld [vmem:[%s2 + $0x1c] sm:$0xf]
  %v84 = vld [vmem:[%s2 + $0x20] sm:$0xf]
  %v85 = vld [vmem:[%s2 + $0x24] sm:$0xf]
  %v86 = vld [vmem:[%s2 + $0x28] sm:$0xf]
  %v87 = vld [vmem:[%s2 + $0x2c] sm:$0xf]
  %v88 = vld [vmem:[%s2 + $0x30] sm:$0xf]
  %v89 = vld [vmem:[%s2 + $0x34] sm:$0xf]
  %v90 = vld [vmem:[%s2 + $0x38] sm:$0xf]
  %v91 = vld [vmem:[%s2 + $0x3c] sm:$0xf]
  %v108 = vunpack.c.l.b16 %v76
  %v109 = vunpack.c.l.b16 %v77
  %v110 = vunpack.c.l.b16 %v78
  %v111 = vunpack.c.l.b16 %v79
  %v112 = vunpack.c.l.b16 %v80
  %v113 = vunpack.c.l.b16 %v81
  %v114 = vunpack.c.l.b16 %v82
  %v115 = vunpack.c.l.b16 %v83
  %v116 = vunpack.c.l.b16 %v84
  %v117 = vunpack.c.l.b16 %v85
  %v118 = vunpack.c.l.b16 %v86
  %v119 = vunpack.c.l.b16 %v87
  %v120 = vunpack.c.l.b16 %v88
  %v121 = vunpack.c.l.b16 %v89
  %v122 = vunpack.c.l.b16 %v90
  %v123 = vunpack.c.l.b16 %v91
  %v124 = vpack.c.b16 %v109, %v108
  %v125 = vpack.c.b16 %v111, %v110
  %v126 = vpack.c.b16 %v113, %v112
  %v127 = vpack.c.b16 %v115, %v114
  %v128 = vpack.c.b16 %v117, %v116
  %v129 = vpack.c.b16 %v119, %v118
  %v130 = vpack.c.b16 %v121, %v120
  %v131 = vpack.c.b16 %v123, %v122
  %140 = vmatpush.bf16.msra.mxu0 %v59
  %141 = vmatpush.bf16.msra.mxu0 %v58
  %142 = vmatpush.bf16.msra.mxu0 %v57
  %143 = vmatpush.bf16.msra.mxu0 %v56
  %144 = vmatpush.bf16.msra.mxu0 %v55
  %145 = vmatpush.bf16.msra.mxu0 %v54
  %146 = vmatpush.bf16.msra.mxu0 %v53
  %147 = vmatpush.bf16.msra.mxu0 %v52
  %148 = vmatmul.bf16.gmra.mxu0 %v124
  %v149 = vpop.f32.mrf.mxu0
  %v150 = vadd.f32 0.0, %v149
  %v151 = vpop.f32.mrf.mxu0
  %v152 = vadd.f32 0.0, %v151
  %153 = vmatmul.bf16.gmra.mxu0 %v125
  %v154 = vpop.f32.mrf.mxu0
  %v155 = vadd.f32 0.0, %v154
  %v156 = vpop.f32.mrf.mxu0
  %v157 = vadd.f32 0.0, %v156
  %158 = vmatmul.bf16.gmra.mxu0 %v126
  %v159 = vpop.f32.mrf.mxu0
  %v160 = vadd.f32 0.0, %v159
  %v161 = vpop.f32.mrf.mxu0
  %v162 = vadd.f32 0.0, %v161
  %163 = vmatmul.bf16.gmra.mxu0 %v127
  %v164 = vpop.f32.mrf.mxu0
  %v165 = vadd.f32 0.0, %v164
  %v166 = vpop.f32.mrf.mxu0
  %v167 = vadd.f32 0.0, %v166
  %168 = vmatmul.bf16.gmra.mxu0 %v128
  %v169 = vpop.f32.mrf.mxu0
  %v170 = vadd.f32 0.0, %v169
  %v171 = vpop.f32.mrf.mxu0
  %v172 = vadd.f32 0.0, %v171
  %173 = vmatmul.bf16.gmra.mxu0 %v129
  %v174 = vpop.f32.mrf.mxu0
  %v175 = vadd.f32 0.0, %v174
  %v176 = vpop.f32.mrf.mxu0
  %v177 = vadd.f32 0.0, %v176
  %178 = vmatmul.bf16.gmra.mxu0 %v130
  %v179 = vpop.f32.mrf.mxu0
  %v180 = vadd.f32 0.0, %v179
  %v181 = vpop.f32.mrf.mxu0
  %v182 = vadd.f32 0.0, %v181
  %183 = vmatmul.bf16.gmra.mxu0 %v131
  %v184 = vpop.f32.mrf.mxu0
  %v185 = vadd.f32 0.0, %v184
  %v186 = vpop.f32.mrf.mxu0
  %v187 = vadd.f32 0.0, %v186
  %188 = vdwg.mxu0
  %v189 = vadd.f32 %v60, %v150
  %v190 = vadd.f32 %v61, %v152
  %v191 = vadd.f32 %v62, %v155
  %v192 = vadd.f32 %v63, %v157
  %v193 = vadd.f32 %v64, %v160
  %v194 = vadd.f32 %v65, %v162
  %v195 = vadd.f32 %v66, %v165
  %v196 = vadd.f32 %v67, %v167
  %v197 = vadd.f32 %v68, %v170
  %v198 = vadd.f32 %v69, %v172
  %v199 = vadd.f32 %v70, %v175
  %v200 = vadd.f32 %v71, %v177
  %v201 = vadd.f32 %v72, %v180
  %v202 = vadd.f32 %v73, %v182
  %v203 = vadd.f32 %v74, %v185
  %v204 = vadd.f32 %v75, %v187
  %205 = vst [vmem:[#allocation2] sm:$0xff] %v189
  %206 = vst [vmem:[#allocation2 + $0x8] sm:$0xff] %v190
  %207 = vst [vmem:[#allocation2 + $0x10] sm:$0xff] %v191
  %208 = vst [vmem:[#allocation2 + $0x18] sm:$0xff] %v192
  %209 = vst [vmem:[#allocation2 + $0x20] sm:$0xff] %v193
  %210 = vst [vmem:[#allocation2 + $0x28] sm:$0xff] %v194
  %211 = vst [vmem:[#allocation2 + $0x30] sm:$0xff] %v195
  %212 = vst [vmem:[#allocation2 + $0x38] sm:$0xff] %v196
  %213 = vst [vmem:[#allocation2 + $0x40] sm:$0xff] %v197
  %214 = vst [vmem:[#allocation2 + $0x48] sm:$0xff] %v198
  %215 = vst [vmem:[#allocation2 + $0x50] sm:$0xff] %v199
  %216 = vst [vmem:[#allocation2 + $0x58] sm:$0xff] %v200
  %217 = vst [vmem:[#allocation2 + $0x60] sm:$0xff] %v201
  %218 = vst [vmem:[#allocation2 + $0x68] sm:$0xff] %v202
  %219 = vst [vmem:[#allocation2 + $0x70] sm:$0xff] %v203
  %220 = vst [vmem:[#allocation2 + $0x78] sm:$0xff] %v204
  // Predicated region
  $region18: #{gnn_forward.8} parent=0 // pred_check
    %p221 = pneg %p14
  $region19: #{gnn_forward.8} parent=0 // pred_check_branch
    %223 = sbr.rel (%p221) target = $region21
  $region20: #{gnn_forward.8} parent=0 // pred_region
    %v224 = vld [vmem:[#allocation2] sm:$0xff]
    %v225 = vld [vmem:[#allocation2 + $0x8] sm:$0xff]
    %v226 = vld [vmem:[#allocation2 + $0x10] sm:$0xff]
    %v227 = vld [vmem:[#allocation2 + $0x18] sm:$0xff]
    %v228 = vld [vmem:[#allocation2 + $0x20] sm:$0xff]
    %v229 = vld [vmem:[#allocation2 + $0x28] sm:$0xff]
    %v230 = vld [vmem:[#allocation2 + $0x30] sm:$0xff]
    %v231 = vld [vmem:[#allocation2 + $0x38] sm:$0xff]
    %v232 = vld [vmem:[#allocation2 + $0x40] sm:$0xff]
    %v233 = vld [vmem:[#allocation2 + $0x48] sm:$0xff]
    %v234 = vld [vmem:[#allocation2 + $0x50] sm:$0xff]
    %v235 = vld [vmem:[#allocation2 + $0x58] sm:$0xff]
    %v236 = vld [vmem:[#allocation2 + $0x60] sm:$0xff]
    %v237 = vld [vmem:[#allocation2 + $0x68] sm:$0xff]
    %v238 = vld [vmem:[#allocation2 + $0x70] sm:$0xff]
    %v239 = vld [vmem:[#allocation2 + $0x78] sm:$0xff]
    %v240 = vmul.f32 %v224, 0.9
    %v241 = vmul.f32 %v225, 0.9
    %v242 = vmul.f32 %v226, 0.9
    %v243 = vmul.f32 %v227, 0.9
    %v244 = vmul.f32 %v228, 0.9
    %v245 = vmul.f32 %v229, 0.9
    %v246 = vmul.f32 %v230, 0.9
    %v247 = vmul.f32 %v231, 0.9
    %v248 = vmul.f32 %v232, 0.9
    %v249 = vmul.f32 %v233, 0.9
    %v250 = vmul.f32 %v234, 0.9
    %v251 = vmul.f32 %v235, 0.9
    %v252 = vmul.f32 %v236, 0.9
    %v253 = vmul.f32 %v237, 0.9
    %v254 = vmul.f32 %v238, 0.9
    %v255 = vmul.f32 %v239, 0.9
    %v256 = vld [vmem:[%s1] sm:$0xff]
    %v257 = vld [vmem:[%s1 + $0x8] sm:$0xff]
    %v258 = vld [vmem:[%s1 + $0x10] sm:$0xff]
    %v259 = vld [vmem:[%s1 + $0x18] sm:$0xff]
    %v260 = vld [vmem:[%s1 + $0x20] sm:$0xff]
    %v261 = vld [vmem:[%s1 + $0x28] sm:$0xff]
    %v262 = vld [vmem:[%s1 + $0x30] sm:$0xff]
    %v263 = vld [vmem:[%s1 + $0x38] sm:$0xff]
    %v264 = vld [vmem:[%s1 + $0x40] sm:$0xff]
    %v265 = vld [vmem:[%s1 + $0x48] sm:$0xff]
    %v266 = vld [vmem:[%s1 + $0x50] sm:$0xff]
    %v267 = vld [vmem:[%s1 + $0x58] sm:$0xff]
    %v268 = vld [vmem:[%s1 + $0x60] sm:$0xff]
    %v269 = vld [vmem:[%s1 + $0x68] sm:$0xff]
    %v270 = vld [vmem:[%s1 + $0x70] sm:$0xff]
    %v271 = vld [vmem:[%s1 + $0x78] sm:$0xff]
    %v272 = vmul.f32 %v256, 0.1
    %v273 = vmul.f32 %v257, 0.1
    %v274 = vmul.f32 %v258, 0.1
    %v275 = vmul.f32 %v259, 0.1
    %v276 = vmul.f32 %v260, 0.1
    %v277 = vmul.f32 %v261, 0.1
    %v278 = vmul.f32 %v262, 0.1
    %v279 = vmul.f32 %v263, 0.1
    %v280 = vmul.f32 %v264, 0.1
    %v281 = vmul.f32 %v265, 0.1
    %v282 = vmul.f32 %v266, 0.1
    %v283 = vmul.f32 %v267, 0.1
    %v284 = vmul.f32 %v268, 0.1
    %v285 = vmul.f32 %v269, 0.1
    %v286 = vmul.f32 %v270, 0.1
    %v287 = vmul.f32 %v271, 0.1
    %v288 = vadd.f32 %v240, %v272
    %v289 = vadd.f32 %v241, %v273
    %v290 = vadd.f32 %v242, %v274
    %v291 = vadd.f32 %v243, %v275
    %v292 = vadd.f32 %v244, %v276
    %v293 = vadd.f32 %v245, %v277
    %v294 = vadd.f32 %v246, %v278
    %v295 = vadd.f32 %v247, %v279
    %v296 = vadd.f32 %v248, %v280
    %v297 = vadd.f32 %v249, %v281
    %v298 = vadd.f32 %v250, %v282
    %v299 = vadd.f32 %v251, %v283
    %v300 = vadd.f32 %v252, %v284
    %v301 = vadd.f32 %v253, %v285
    %v302 = vadd.f32 %v254, %v286
    %v303 = vadd.f32 %v255, %v287
    %304 = vst [vmem:[%s3] sm:$0xff] %v288
    %305 = vst [vmem:[%s3 + $0x8] sm:$0xff] %v289
    %306 = vst [vmem:[%s3 + $0x10] sm:$0xff] %v290
    %307 = vst [vmem:[%s3 + $0x18] sm:$0xff] %v291
    %308 = vst [vmem:[%s3 + $0x20] sm:$0xff] %v292
    %309 = vst [vmem:[%s3 + $0x28] sm:$0xff] %v293
    %310 = vst [vmem:[%s3 + $0x30] sm:$0xff] %v294
    %311 = vst [vmem:[%s3 + $0x38] sm:$0xff] %v295
    %312 = vst [vmem:[%s3 + $0x40] sm:$0xff] %v296
    %313 = vst [vmem:[%s3 + $0x48] sm:$0xff] %v297
    %314 = vst [vmem:[%s3 + $0x50] sm:$0xff] %v298
    %315 = vst [vmem:[%s3 + $0x58] sm:$0xff] %v299
    %316 = vst [vmem:[%s3 + $0x60] sm:$0xff] %v300
    %317 = vst [vmem:[%s3 + $0x68] sm:$0xff] %v301
    %318 = vst [vmem:[%s3 + $0x70] sm:$0xff] %v302
    %319 = vst [vmem:[%s3 + $0x78] sm:$0xff] %v303
  $region21: #{gnn_forward.8} parent=0 // pred_fallthru
    _
  // Predicated region
  $region22: #{gnn_forward.8} parent=0 // pred_check
    _
  $region23: #{gnn_forward.8} parent=0 // pred_check_branch
    %321 = sbr.rel (0) target = $region25
  $region24: #{gnn_forward.8} parent=0 // pred_region
    _
  $region25: #{gnn_forward.8} parent=0 // pred_fallthru
    _
  // Predicated region
  $region26: #{gnn_forward.8} parent=0 // pred_check
    _
  $region27: #{gnn_forward.8} parent=0 // pred_check_branch
    %323 = sbr.rel (0) target = $region29
  $region28: #{gnn_forward.8} parent=0 // pred_region
    _
  $region29: #{gnn_forward.8} parent=0 // pred_fallthru
    _

// kernel: gnn_forward.7
$region0: #{gnn_forward.7}
  #allocation0 [shape = 'u32[]', space=smem, size = 0x4, offset = 0x4, fixed_abs, tag = 'smem constant byte address 0x4 - core index']
  #allocation1 [shape = 'u32[72,128]{1,0:T(1,128)}', space=vmem, size = 0x9000, scoped, tag = 'internal scratch']
  #allocation2 [shape = 'f32[128,128]{1,0:T(8,128)}', space=vmem, size = 0x10000, scoped, tag = 'scratch operand']
  %s0 = inlined_call_operand.vmem [shape: f32[128,128], index: 0, kind: input, shape index: {}]
  %s1 = inlined_call_operand.vmem [shape: f32[1,128], index: 1, kind: input, shape index: {}]
  %s2 = inlined_call_operand.vmem [shape: bf16[128,128], index: 2, kind: input, shape index: {}]
  %s3 = inlined_call_operand.vmem [shape: f32[128,128], index: 3, kind: output, shape index: {}]
  %s4 = sld [smem:[#allocation0]]
  $region30: #{gnn_forward.7} parent=0
    _
  %s6 = ssub.s32 1, %s4
  %s7 = scalar_select 0, %s6, %s4
  // Predicated region
  $region2: #{gnn_forward.7} parent=0 // pred_check
    _
  $region3: #{gnn_forward.7} parent=0 // pred_check_branch
    %9 = sbr.rel (0) target = $region5
  $region4: #{gnn_forward.7} parent=0 // pred_region
    _
  $region5: #{gnn_forward.7} parent=0 // pred_fallthru
    _
  // Predicated region
  $region6: #{gnn_forward.7} parent=0 // pred_check
    _
  $region7: #{gnn_forward.7} parent=0 // pred_check_branch
    %11 = sbr.rel (0) target = $region9
  $region8: #{gnn_forward.7} parent=0 // pred_region
    _
  $region9: #{gnn_forward.7} parent=0 // pred_fallthru
    _
  // Predicated region
  $region10: #{gnn_forward.7} parent=0 // pred_check
    _
  $region11: #{gnn_forward.7} parent=0 // pred_check_branch
    %13 = sbr.rel (0) target = $region13
  $region12: #{gnn_forward.7} parent=0 // pred_region
    _
  $region13: #{gnn_forward.7} parent=0 // pred_fallthru
    _
  %p14 = scmp.eq.s32.totalorder 0, 0
  // Predicated region
  $region14: #{gnn_forward.7} parent=0 // pred_check
    %p15 = pneg %p14
  $region15: #{gnn_forward.7} parent=0 // pred_check_branch
    %17 = sbr.rel (%p15) target = $region17
  $region16: #{gnn_forward.7} parent=0 // pred_region
    %18 = vst [vmem:[#allocation2] sm:$0xff] 0.0
    %19 = vst [vmem:[#allocation2 + $0x8] sm:$0xff] 0.0
    %20 = vst [vmem:[#allocation2 + $0x10] sm:$0xff] 0.0
    %21 = vst [vmem:[#allocation2 + $0x18] sm:$0xff] 0.0
    %22 = vst [vmem:[#allocation2 + $0x20] sm:$0xff] 0.0
    %23 = vst [vmem:[#allocation2 + $0x28] sm:$0xff] 0.0
    %24 = vst [vmem:[#allocation2 + $0x30] sm:$0xff] 0.0
    %25 = vst [vmem:[#allocation2 + $0x38] sm:$0xff] 0.0
    %26 = vst [vmem:[#allocation2 + $0x40] sm:$0xff] 0.0
    %27 = vst [vmem:[#allocation2 + $0x48] sm:$0xff] 0.0
    %28 = vst [vmem:[#allocation2 + $0x50] sm:$0xff] 0.0
    %29 = vst [vmem:[#allocation2 + $0x58] sm:$0xff] 0.0
    %30 = vst [vmem:[#allocation2 + $0x60] sm:$0xff] 0.0
    %31 = vst [vmem:[#allocation2 + $0x68] sm:$0xff] 0.0
    %32 = vst [vmem:[#allocation2 + $0x70] sm:$0xff] 0.0
    %33 = vst [vmem:[#allocation2 + $0x78] sm:$0xff] 0.0
  $region17: #{gnn_forward.7} parent=0 // pred_fallthru
    _
  %s34 = smul.u32 0, 128
  %s35 = scalar_lea.vmem %s0, %s34
  %v36 = vld [vmem:[%s35] sm:$0xff]
  %v37 = vld [vmem:[%s35 + $0x8] sm:$0xff]
  %v38 = vld [vmem:[%s35 + $0x10] sm:$0xff]
  %v39 = vld [vmem:[%s35 + $0x18] sm:$0xff]
  %v40 = vld [vmem:[%s35 + $0x20] sm:$0xff]
  %v41 = vld [vmem:[%s35 + $0x28] sm:$0xff]
  %v42 = vld [vmem:[%s35 + $0x30] sm:$0xff]
  %v43 = vld [vmem:[%s35 + $0x38] sm:$0xff]
  %v44 = vld [vmem:[%s35 + $0x40] sm:$0xff]
  %v45 = vld [vmem:[%s35 + $0x48] sm:$0xff]
  %v46 = vld [vmem:[%s35 + $0x50] sm:$0xff]
  %v47 = vld [vmem:[%s35 + $0x58] sm:$0xff]
  %v48 = vld [vmem:[%s35 + $0x60] sm:$0xff]
  %v49 = vld [vmem:[%s35 + $0x68] sm:$0xff]
  %v50 = vld [vmem:[%s35 + $0x70] sm:$0xff]
  %v51 = vld [vmem:[%s35 + $0x78] sm:$0xff]
  %v52 = vpack.c.bf16 %v37, %v36
  %v53 = vpack.c.bf16 %v39, %v38
  %v54 = vpack.c.bf16 %v41, %v40
  %v55 = vpack.c.bf16 %v43, %v42
  %v56 = vpack.c.bf16 %v45, %v44
  %v57 = vpack.c.bf16 %v47, %v46
  %v58 = vpack.c.bf16 %v49, %v48
  %v59 = vpack.c.bf16 %v51, %v50
  %v60 = vld [vmem:[#allocation2] sm:$0xff]
  %v61 = vld [vmem:[#allocation2 + $0x8] sm:$0xff]
  %v62 = vld [vmem:[#allocation2 + $0x10] sm:$0xff]
  %v63 = vld [vmem:[#allocation2 + $0x18] sm:$0xff]
  %v64 = vld [vmem:[#allocation2 + $0x20] sm:$0xff]
  %v65 = vld [vmem:[#allocation2 + $0x28] sm:$0xff]
  %v66 = vld [vmem:[#allocation2 + $0x30] sm:$0xff]
  %v67 = vld [vmem:[#allocation2 + $0x38] sm:$0xff]
  %v68 = vld [vmem:[#allocation2 + $0x40] sm:$0xff]
  %v69 = vld [vmem:[#allocation2 + $0x48] sm:$0xff]
  %v70 = vld [vmem:[#allocation2 + $0x50] sm:$0xff]
  %v71 = vld [vmem:[#allocation2 + $0x58] sm:$0xff]
  %v72 = vld [vmem:[#allocation2 + $0x60] sm:$0xff]
  %v73 = vld [vmem:[#allocation2 + $0x68] sm:$0xff]
  %v74 = vld [vmem:[#allocation2 + $0x70] sm:$0xff]
  %v75 = vld [vmem:[#allocation2 + $0x78] sm:$0xff]
  %v76 = vld [vmem:[%s2] sm:$0xf]
  %v77 = vld [vmem:[%s2 + $0x4] sm:$0xf]
  %v78 = vld [vmem:[%s2 + $0x8] sm:$0xf]
  %v79 = vld [vmem:[%s2 + $0xc] sm:$0xf]
  %v80 = vld [vmem:[%s2 + $0x10] sm:$0xf]
  %v81 = vld [vmem:[%s2 + $0x14] sm:$0xf]
  %v82 = vld [vmem:[%s2 + $0x18] sm:$0xf]
  %v83 = vld [vmem:[%s2 + $0x1c] sm:$0xf]
  %v84 = vld [vmem:[%s2 + $0x20] sm:$0xf]
  %v85 = vld [vmem:[%s2 + $0x24] sm:$0xf]
  %v86 = vld [vmem:[%s2 + $0x28] sm:$0xf]
  %v87 = vld [vmem:[%s2 + $0x2c] sm:$0xf]
  %v88 = vld [vmem:[%s2 + $0x30] sm:$0xf]
  %v89 = vld [vmem:[%s2 + $0x34] sm:$0xf]
  %v90 = vld [vmem:[%s2 + $0x38] sm:$0xf]
  %v91 = vld [vmem:[%s2 + $0x3c] sm:$0xf]
  %v108 = vunpack.c.l.b16 %v76
  %v109 = vunpack.c.l.b16 %v77
  %v110 = vunpack.c.l.b16 %v78
  %v111 = vunpack.c.l.b16 %v79
  %v112 = vunpack.c.l.b16 %v80
  %v113 = vunpack.c.l.b16 %v81
  %v114 = vunpack.c.l.b16 %v82
  %v115 = vunpack.c.l.b16 %v83
  %v116 = vunpack.c.l.b16 %v84
  %v117 = vunpack.c.l.b16 %v85
  %v118 = vunpack.c.l.b16 %v86
  %v119 = vunpack.c.l.b16 %v87
  %v120 = vunpack.c.l.b16 %v88
  %v121 = vunpack.c.l.b16 %v89
  %v122 = vunpack.c.l.b16 %v90
  %v123 = vunpack.c.l.b16 %v91
  %v124 = vpack.c.b16 %v109, %v108
  %v125 = vpack.c.b16 %v111, %v110
  %v126 = vpack.c.b16 %v113, %v112
  %v127 = vpack.c.b16 %v115, %v114
  %v128 = vpack.c.b16 %v117, %v116
  %v129 = vpack.c.b16 %v119, %v118
  %v130 = vpack.c.b16 %v121, %v120
  %v131 = vpack.c.b16 %v123, %v122
  %140 = vmatpush.bf16.msra.mxu0 %v59
  %141 = vmatpush.bf16.msra.mxu0 %v58
  %142 = vmatpush.bf16.msra.mxu0 %v57
  %143 = vmatpush.bf16.msra.mxu0 %v56
  %144 = vmatpush.bf16.msra.mxu0 %v55
  %145 = vmatpush.bf16.msra.mxu0 %v54
  %146 = vmatpush.bf16.msra.mxu0 %v53
  %147 = vmatpush.bf16.msra.mxu0 %v52
  %148 = vmatmul.bf16.gmra.mxu0 %v124
  %v149 = vpop.f32.mrf.mxu0
  %v150 = vadd.f32 0.0, %v149
  %v151 = vpop.f32.mrf.mxu0
  %v152 = vadd.f32 0.0, %v151
  %153 = vmatmul.bf16.gmra.mxu0 %v125
  %v154 = vpop.f32.mrf.mxu0
  %v155 = vadd.f32 0.0, %v154
  %v156 = vpop.f32.mrf.mxu0
  %v157 = vadd.f32 0.0, %v156
  %158 = vmatmul.bf16.gmra.mxu0 %v126
  %v159 = vpop.f32.mrf.mxu0
  %v160 = vadd.f32 0.0, %v159
  %v161 = vpop.f32.mrf.mxu0
  %v162 = vadd.f32 0.0, %v161
  %163 = vmatmul.bf16.gmra.mxu0 %v127
  %v164 = vpop.f32.mrf.mxu0
  %v165 = vadd.f32 0.0, %v164
  %v166 = vpop.f32.mrf.mxu0
  %v167 = vadd.f32 0.0, %v166
  %168 = vmatmul.bf16.gmra.mxu0 %v128
  %v169 = vpop.f32.mrf.mxu0
  %v170 = vadd.f32 0.0, %v169
  %v171 = vpop.f32.mrf.mxu0
  %v172 = vadd.f32 0.0, %v171
  %173 = vmatmul.bf16.gmra.mxu0 %v129
  %v174 = vpop.f32.mrf.mxu0
  %v175 = vadd.f32 0.0, %v174
  %v176 = vpop.f32.mrf.mxu0
  %v177 = vadd.f32 0.0, %v176
  %178 = vmatmul.bf16.gmra.mxu0 %v130
  %v179 = vpop.f32.mrf.mxu0
  %v180 = vadd.f32 0.0, %v179
  %v181 = vpop.f32.mrf.mxu0
  %v182 = vadd.f32 0.0, %v181
  %183 = vmatmul.bf16.gmra.mxu0 %v131
  %v184 = vpop.f32.mrf.mxu0
  %v185 = vadd.f32 0.0, %v184
  %v186 = vpop.f32.mrf.mxu0
  %v187 = vadd.f32 0.0, %v186
  %188 = vdwg.mxu0
  %v189 = vadd.f32 %v60, %v150
  %v190 = vadd.f32 %v61, %v152
  %v191 = vadd.f32 %v62, %v155
  %v192 = vadd.f32 %v63, %v157
  %v193 = vadd.f32 %v64, %v160
  %v194 = vadd.f32 %v65, %v162
  %v195 = vadd.f32 %v66, %v165
  %v196 = vadd.f32 %v67, %v167
  %v197 = vadd.f32 %v68, %v170
  %v198 = vadd.f32 %v69, %v172
  %v199 = vadd.f32 %v70, %v175
  %v200 = vadd.f32 %v71, %v177
  %v201 = vadd.f32 %v72, %v180
  %v202 = vadd.f32 %v73, %v182
  %v203 = vadd.f32 %v74, %v185
  %v204 = vadd.f32 %v75, %v187
  %205 = vst [vmem:[#allocation2] sm:$0xff] %v189
  %206 = vst [vmem:[#allocation2 + $0x8] sm:$0xff] %v190
  %207 = vst [vmem:[#allocation2 + $0x10] sm:$0xff] %v191
  %208 = vst [vmem:[#allocation2 + $0x18] sm:$0xff] %v192
  %209 = vst [vmem:[#allocation2 + $0x20] sm:$0xff] %v193
  %210 = vst [vmem:[#allocation2 + $0x28] sm:$0xff] %v194
  %211 = vst [vmem:[#allocation2 + $0x30] sm:$0xff] %v195
  %212 = vst [vmem:[#allocation2 + $0x38] sm:$0xff] %v196
  %213 = vst [vmem:[#allocation2 + $0x40] sm:$0xff] %v197
  %214 = vst [vmem:[#allocation2 + $0x48] sm:$0xff] %v198
  %215 = vst [vmem:[#allocation2 + $0x50] sm:$0xff] %v199
  %216 = vst [vmem:[#allocation2 + $0x58] sm:$0xff] %v200
  %217 = vst [vmem:[#allocation2 + $0x60] sm:$0xff] %v201
  %218 = vst [vmem:[#allocation2 + $0x68] sm:$0xff] %v202
  %219 = vst [vmem:[#allocation2 + $0x70] sm:$0xff] %v203
  %220 = vst [vmem:[#allocation2 + $0x78] sm:$0xff] %v204
  // Predicated region
  $region18: #{gnn_forward.7} parent=0 // pred_check
    %p221 = pneg %p14
  $region19: #{gnn_forward.7} parent=0 // pred_check_branch
    %223 = sbr.rel (%p221) target = $region21
  $region20: #{gnn_forward.7} parent=0 // pred_region
    %v224 = vld [vmem:[#allocation2] sm:$0xff]
    %v225 = vld [vmem:[#allocation2 + $0x8] sm:$0xff]
    %v226 = vld [vmem:[#allocation2 + $0x10] sm:$0xff]
    %v227 = vld [vmem:[#allocation2 + $0x18] sm:$0xff]
    %v228 = vld [vmem:[#allocation2 + $0x20] sm:$0xff]
    %v229 = vld [vmem:[#allocation2 + $0x28] sm:$0xff]
    %v230 = vld [vmem:[#allocation2 + $0x30] sm:$0xff]
    %v231 = vld [vmem:[#allocation2 + $0x38] sm:$0xff]
    %v232 = vld [vmem:[#allocation2 + $0x40] sm:$0xff]
    %v233 = vld [vmem:[#allocation2 + $0x48] sm:$0xff]
    %v234 = vld [vmem:[#allocation2 + $0x50] sm:$0xff]
    %v235 = vld [vmem:[#allocation2 + $0x58] sm:$0xff]
    %v236 = vld [vmem:[#allocation2 + $0x60] sm:$0xff]
    %v237 = vld [vmem:[#allocation2 + $0x68] sm:$0xff]
    %v238 = vld [vmem:[#allocation2 + $0x70] sm:$0xff]
    %v239 = vld [vmem:[#allocation2 + $0x78] sm:$0xff]
    %v240 = vld [vmem:[%s1] sm:$0x1]
    %v242 = vperm.slane %v240, 0
    %v244 = vadd.f32 %v224, %v242
    %v245 = vadd.f32 %v225, %v242
    %v246 = vadd.f32 %v226, %v242
    %v247 = vadd.f32 %v227, %v242
    %v248 = vadd.f32 %v228, %v242
    %v249 = vadd.f32 %v229, %v242
    %v250 = vadd.f32 %v230, %v242
    %v251 = vadd.f32 %v231, %v242
    %v252 = vadd.f32 %v232, %v242
    %v253 = vadd.f32 %v233, %v242
    %v254 = vadd.f32 %v234, %v242
    %v255 = vadd.f32 %v235, %v242
    %v256 = vadd.f32 %v236, %v242
    %v257 = vadd.f32 %v237, %v242
    %v258 = vadd.f32 %v238, %v242
    %v259 = vadd.f32 %v239, %v242
    %v260 = vmax.f32 %v244, 0.0
    %v261 = vmax.f32 %v245, 0.0
    %v262 = vmax.f32 %v246, 0.0
    %v263 = vmax.f32 %v247, 0.0
    %v264 = vmax.f32 %v248, 0.0
    %v265 = vmax.f32 %v249, 0.0
    %v266 = vmax.f32 %v250, 0.0
    %v267 = vmax.f32 %v251, 0.0
    %v268 = vmax.f32 %v252, 0.0
    %v269 = vmax.f32 %v253, 0.0
    %v270 = vmax.f32 %v254, 0.0
    %v271 = vmax.f32 %v255, 0.0
    %v272 = vmax.f32 %v256, 0.0
    %v273 = vmax.f32 %v257, 0.0
    %v274 = vmax.f32 %v258, 0.0
    %v275 = vmax.f32 %v259, 0.0
    %276 = vst [vmem:[%s3] sm:$0xff] %v260
    %277 = vst [vmem:[%s3 + $0x8] sm:$0xff] %v261
    %278 = vst [vmem:[%s3 + $0x10] sm:$0xff] %v262
    %279 = vst [vmem:[%s3 + $0x18] sm:$0xff] %v263
    %280 = vst [vmem:[%s3 + $0x20] sm:$0xff] %v264
    %281 = vst [vmem:[%s3 + $0x28] sm:$0xff] %v265
    %282 = vst [vmem:[%s3 + $0x30] sm:$0xff] %v266
    %283 = vst [vmem:[%s3 + $0x38] sm:$0xff] %v267
    %284 = vst [vmem:[%s3 + $0x40] sm:$0xff] %v268
    %285 = vst [vmem:[%s3 + $0x48] sm:$0xff] %v269
    %286 = vst [vmem:[%s3 + $0x50] sm:$0xff] %v270
    %287 = vst [vmem:[%s3 + $0x58] sm:$0xff] %v271
    %288 = vst [vmem:[%s3 + $0x60] sm:$0xff] %v272
    %289 = vst [vmem:[%s3 + $0x68] sm:$0xff] %v273
    %290 = vst [vmem:[%s3 + $0x70] sm:$0xff] %v274
    %291 = vst [vmem:[%s3 + $0x78] sm:$0xff] %v275
  $region21: #{gnn_forward.7} parent=0 // pred_fallthru
    _
  // Predicated region
  $region22: #{gnn_forward.7} parent=0 // pred_check
    _
  $region23: #{gnn_forward.7} parent=0 // pred_check_branch
    %293 = sbr.rel (0) target = $region25
  $region24: #{gnn_forward.7} parent=0 // pred_region
    _
  $region25: #{gnn_forward.7} parent=0 // pred_fallthru
    _
  // Predicated region
  $region26: #{gnn_forward.7} parent=0 // pred_check
    _
  $region27: #{gnn_forward.7} parent=0 // pred_check_branch
    %295 = sbr.rel (0) target = $region29
  $region28: #{gnn_forward.7} parent=0 // pred_region
    _
  $region29: #{gnn_forward.7} parent=0 // pred_fallthru
    _

</llo_original>
